<compile_context>
chip_gen: v6e
topology: v6e:2x2x1
jax: 0.10.0
libtpu: 0.0.40
codegen_flags: <defaults>
</compile_context>

<pallas_src>
import jax
import jax.numpy as jnp
from jax.experimental import pallas as pl
from jax.experimental.pallas import tpu as pltpu


def _round_up(x, m):
    return (x + m - 1) // m * m


def _pv_head_kernel(x_ref, wpc_ref, bpc_ref, wpf_ref, bpf_ref,
                    wvc_ref, bvc_ref, wv1_ref, bv1_ref, wv2_ref, bv2_ref,
                    p_ref, v_ref):
    """One batch tile: x_ref is (HW, TB, Cin); outputs p (TB, Pout), v (TB, 1)."""
    hw = x_ref.shape[0]
    tb = x_ref.shape[1]
    pout = p_ref.shape[1]
    vmid = wv1_ref.shape[2]

    # 1x1-conv weights with BatchNorm already folded in (done once in the wrapper).
    wpc = wpc_ref[...].astype(jnp.float32)   # (Cin, Pc)
    bpc = bpc_ref[...].astype(jnp.float32)   # (1, Pc)
    wvc = wvc_ref[...].astype(jnp.float32)   # (Cin, Vc)
    bvc = bvc_ref[...].astype(jnp.float32)   # (1, Vc)

    def body(s, carry):
        p_acc, v_acc = carry
        xs = x_ref[s].astype(jnp.float32)                      # (TB, Cin), contiguous slab
        # 1x1 conv (+ folded BN) + ReLU at spatial position s.
        cp = jnp.maximum(
            jnp.dot(xs, wpc, preferred_element_type=jnp.float32) + bpc, 0.0)
        cv = jnp.maximum(
            jnp.dot(xs, wvc, preferred_element_type=jnp.float32) + bvc, 0.0)
        # flatten + Linear == sum over spatial slices of (conv_s @ W_s); W pre-permuted
        # in the wrapper to (HW, C, out) so spatial slice s is a plain 2-D matmul.
        p_acc = p_acc + jnp.dot(cp, wpf_ref[s].astype(jnp.float32),
                                preferred_element_type=jnp.float32)
        v_acc = v_acc + jnp.dot(cv, wv1_ref[s].astype(jnp.float32),
                                preferred_element_type=jnp.float32)
        return p_acc, v_acc

    p0 = jnp.zeros((tb, pout), jnp.float32)
    v0 = jnp.zeros((tb, vmid), jnp.float32)
    p_acc, v_acc = jax.lax.fori_loop(0, hw, body, (p0, v0))

    # Policy head: logits (no softmax — matches PyTorch forward()).
    p_ref[...] = (p_acc + bpf_ref[...].astype(jnp.float32)).astype(p_ref.dtype)

    # Value head: relu(fc1) -> fc2 (output width 1, done as lane reduce) -> tanh.
    v1 = jnp.maximum(v_acc + bv1_ref[...].astype(jnp.float32), 0.0)       # (TB, Vm)
    v = jnp.tanh(
        jnp.sum(v1 * wv2_ref[...].astype(jnp.float32), axis=-1, keepdims=True)
        + bv2_ref[...].astype(jnp.float32))                               # (TB, 1)
    v_ref[...] = v.astype(v_ref.dtype)


def _fold_bn_1x1(conv_w, conv_b, gamma, beta, mean, var, eps):
    """Fold inference-mode BatchNorm into a 1x1 conv; return (Cin, O) weight, (1, O) bias."""
    scale = gamma / jnp.sqrt(var + eps)                   # (O,)
    w2 = conv_w[:, :, 0, 0] * scale[:, None]              # (O, Cin)
    b2 = (conv_b - mean) * scale + beta                   # (O,)
    return w2.T.astype(jnp.float32), b2[None, :].astype(jnp.float32)


def policy_value_head(x, params, *, block_b=None, bn_eps=1e-5):
    """Forward pass of PolicyValueHead.

    x: (B, Cin, H, W) NCHW like PyTorch. Returns (p_logits (B, p_output), v (B, 1)), f32.
    """
    B, Cin, H, W = x.shape
    HW = H * W

    wpc, bpc = _fold_bn_1x1(params["p_conv_w"], params["p_conv_b"],
                            params["p_bn_gamma"], params["p_bn_beta"],
                            params["p_bn_mean"], params["p_bn_var"], bn_eps)
    wvc, bvc = _fold_bn_1x1(params["v_conv_w"], params["v_conv_b"],
                            params["v_bn_gamma"], params["v_bn_beta"],
                            params["v_bn_mean"], params["v_bn_var"], bn_eps)
    Pc = wpc.shape[1]
    Vc = wvc.shape[1]

    # PyTorch flattens (B, C, H, W) channel-major: feature index = c*HW + s.
    # Pre-permute the FC weights to (HW, C, out) so the kernel contracts per spatial slice.
    p_fc_w = params["p_fc_w"].astype(jnp.float32)                 # (Pout, Pc*HW)
    Pout = p_fc_w.shape[0]
    wpf = p_fc_w.reshape(Pout, Pc, HW).transpose(2, 1, 0)         # (HW, Pc, Pout)
    bpf = params["p_fc_b"].astype(jnp.float32)[None, :]           # (1, Pout)

    v_fc1_w = params["v_fc1_w"].astype(jnp.float32)               # (Vm, Vc*HW)
    Vm = v_fc1_w.shape[0]
    wv1 = v_fc1_w.reshape(Vm, Vc, HW).transpose(2, 1, 0)          # (HW, Vc, Vm)
    bv1 = params["v_fc1_b"].astype(jnp.float32)[None, :]          # (1, Vm)

    wv2 = params["v_fc2_w"].astype(jnp.float32)                   # (1, Vm)
    bv2 = params["v_fc2_b"].astype(jnp.float32)[None, :]          # (1, 1)

    # Lane-dense, spatial-major activation layout: (HW, B, Cin); each spatial step in the
    # kernel reads a contiguous (TB, Cin) slab (layout plumbing done once here, not per tile).
    x_sbc = x.astype(jnp.float32).reshape(B, Cin, HW).transpose(2, 0, 1)   # (HW, B, Cin)

    # Batch tile size: multiple of 8 sublanes, capped so double-buffered x tiles plus the
    # (small) resident weights stay well inside v7x's tighter VMEM budget.
    if block_b is None:
        block_b = min(256, _round_up(B, 8))
    block_b = max(8, _round_up(block_b, 8))
    B_pad = _round_up(B, block_b)
    if B_pad != B:
        x_sbc = jnp.pad(x_sbc, ((0, 0), (0, B_pad - B), (0, 0)))

    grid = (B_pad // block_b,)

    p_out, v_out = pl.pallas_call(
        _pv_head_kernel,
        grid=grid,
        in_specs=[
            pl.BlockSpec((HW, block_b, Cin), lambda i: (0, i, 0)),   # x (spatial-major)
            pl.BlockSpec((Cin, Pc), lambda i: (0, 0)),               # policy conv w (BN-folded)
            pl.BlockSpec((1, Pc), lambda i: (0, 0)),                 # policy conv b
            pl.BlockSpec((HW, Pc, Pout), lambda i: (0, 0, 0)),       # policy fc w (permuted)
            pl.BlockSpec((1, Pout), lambda i: (0, 0)),               # policy fc b
            pl.BlockSpec((Cin, Vc), lambda i: (0, 0)),               # value conv w (BN-folded)
            pl.BlockSpec((1, Vc), lambda i: (0, 0)),                 # value conv b
            pl.BlockSpec((HW, Vc, Vm), lambda i: (0, 0, 0)),         # value fc1 w (permuted)
            pl.BlockSpec((1, Vm), lambda i: (0, 0)),                 # value fc1 b
            pl.BlockSpec((1, Vm), lambda i: (0, 0)),                 # value fc2 w
            pl.BlockSpec((1, 1), lambda i: (0, 0)),                  # value fc2 b
        ],
        out_specs=[
            pl.BlockSpec((block_b, Pout), lambda i: (i, 0)),         # policy logits
            pl.BlockSpec((block_b, 1), lambda i: (i, 0)),            # value
        ],
        out_shape=[
            jax.ShapeDtypeStruct((B_pad, Pout), jnp.float32),
            jax.ShapeDtypeStruct((B_pad, 1), jnp.float32),
        ],
        compiler_params=pltpu.CompilerParams(
            dimension_semantics=("parallel",)),                      # batch tiles independent
    )(x_sbc, wpc, bpc, wpf, bpf, wvc, bvc, wv1, bv1, wv2, bv2)

    return p_out[:B], v_out[:B]


def _reference_forward(x, params, bn_eps=1e-5):
    """Pure-JAX reference matching the PyTorch module (inference-mode BN)."""
    def conv_bn_relu(x, w, b, gamma, beta, mean, var):
        y = jnp.einsum('bchw,oc->bohw', x, w[:, :, 0, 0]) + b[None, :, None, None]
        y = (y - mean[None, :, None, None]) * (
            gamma[None, :, None, None] / jnp.sqrt(var[None, :, None, None] + bn_eps)
        ) + beta[None, :, None, None]
        return jnp.maximum(y, 0.0)

    B = x.shape[0]
    p = conv_bn_relu(x, params["p_conv_w"], params["p_conv_b"],
                     params["p_bn_gamma"], params["p_bn_beta"],
                     params["p_bn_mean"], params["p_bn_var"])
    p = p.reshape(B, -1) @ params["p_fc_w"].T + params["p_fc_b"]

    v = conv_bn_relu(x, params["v_conv_w"], params["v_conv_b"],
                     params["v_bn_gamma"], params["v_bn_beta"],
                     params["v_bn_mean"], params["v_bn_var"])
    v = v.reshape(B, -1) @ params["v_fc1_w"].T + params["v_fc1_b"]
    v = jnp.maximum(v, 0.0)
    v = jnp.tanh(v @ params["v_fc2_w"].T + params["v_fc2_b"])
    return p, v


if __name__ == "__main__":
    # Small shapes consistent with the module: batch=16, in_channel=8, 4x4 board,
    # p_channel=8, p_output=32, v_channel=4, v_middle=16.
    B, Cin, H, W = 16, 8, 4, 4
    Pc, Pout = 8, 32
    Vc, Vm = 4, 16
    HW = H * W

    key = jax.random.PRNGKey(0)
    ks = jax.random.split(key, 19)

    def normal(k, shape, scale=0.1):
        return scale * jax.random.normal(k, shape, dtype=jnp.float32)

    params = dict(
        p_conv_w=normal(ks[0], (Pc, Cin, 1, 1), 0.3),
        p_conv_b=normal(ks[1], (Pc,)),
        p_bn_gamma=1.0 + normal(ks[2], (Pc,)),
        p_bn_beta=normal(ks[3], (Pc,)),
        p_bn_mean=normal(ks[4], (Pc,)),
        p_bn_var=1.0 + 0.5 * jax.random.uniform(ks[5], (Pc,), dtype=jnp.float32),
        p_fc_w=normal(ks[6], (Pout, Pc * HW), 0.2),
        p_fc_b=normal(ks[7], (Pout,)),
        v_conv_w=normal(ks[8], (Vc, Cin, 1, 1), 0.3),
        v_conv_b=normal(ks[9], (Vc,)),
        v_bn_gamma=1.0 + normal(ks[10], (Vc,)),
        v_bn_beta=normal(ks[11], (Vc,)),
        v_bn_mean=normal(ks[12], (Vc,)),
        v_bn_var=1.0 + 0.5 * jax.random.uniform(ks[13], (Vc,), dtype=jnp.float32),
        v_fc1_w=normal(ks[14], (Vm, Vc * HW), 0.2),
        v_fc1_b=normal(ks[15], (Vm,)),
        v_fc2_w=normal(ks[16], (1, Vm), 0.3),
        v_fc2_b=normal(ks[17], (1,)),
    )
    x = jax.random.normal(ks[18], (B, Cin, H, W), dtype=jnp.float32)

    # block_b=8 -> 2 batch tiles, exercises the grid / pipelining path.
    p, v = policy_value_head(x, params, block_b=8)
    p = jax.block_until_ready(p)
    v = jax.block_until_ready(v)

    p_ref, v_ref = _reference_forward(x, params)
    assert p.shape == (B, Pout) and v.shape == (B, 1)
    assert jnp.allclose(p, p_ref, rtol=1e-4, atol=1e-4), (p, p_ref)
    assert jnp.allclose(v, v_ref, rtol=1e-4, atol=1e-4), (v, v_ref)

    print("KERNEL_OK")
</pallas_src>

<mosaic_0001>
module attributes {stable_mosaic.version = 11 : i64} {
  func.func @_pv_head_kernel(%arg0: i32, %arg1: memref<16x8x8xf32, #tpu.memory_space<vmem>>, %arg2: memref<8x8xf32, #tpu.memory_space<vmem>>, %arg3: memref<1x8xf32, #tpu.memory_space<vmem>>, %arg4: memref<16x8x32xf32, #tpu.memory_space<vmem>>, %arg5: memref<1x32xf32, #tpu.memory_space<vmem>>, %arg6: memref<8x4xf32, #tpu.memory_space<vmem>>, %arg7: memref<1x4xf32, #tpu.memory_space<vmem>>, %arg8: memref<16x4x16xf32, #tpu.memory_space<vmem>>, %arg9: memref<1x16xf32, #tpu.memory_space<vmem>>, %arg10: memref<1x16xf32, #tpu.memory_space<vmem>>, %arg11: memref<1x1xf32, #tpu.memory_space<vmem>>, %arg12: memref<8x32xf32, #tpu.memory_space<vmem>>, %arg13: memref<8x1xf32, #tpu.memory_space<vmem>>) attributes {dimension_semantics = [#tpu.dimension_semantics<parallel>], iteration_bounds = array<i64: 2>, scalar_prefetch = 0 : i64, scratch_operands = 0 : i64, tpu.core_type = #tpu.core_type<tc>, window_params = [{transform_indices = @transform_0, window_bounds = array<i64: 16, 8, 8>}, {pipeline_mode = #tpu.pipeline_mode<synchronous>, transform_indices = @transform_1, window_bounds = array<i64: 8, 8>}, {pipeline_mode = #tpu.pipeline_mode<synchronous>, transform_indices = @transform_2, window_bounds = array<i64: 1, 8>}, {pipeline_mode = #tpu.pipeline_mode<synchronous>, transform_indices = @transform_3, window_bounds = array<i64: 16, 8, 32>}, {pipeline_mode = #tpu.pipeline_mode<synchronous>, transform_indices = @transform_4, window_bounds = array<i64: 1, 32>}, {pipeline_mode = #tpu.pipeline_mode<synchronous>, transform_indices = @transform_5, window_bounds = array<i64: 8, 4>}, {pipeline_mode = #tpu.pipeline_mode<synchronous>, transform_indices = @transform_6, window_bounds = array<i64: 1, 4>}, {pipeline_mode = #tpu.pipeline_mode<synchronous>, transform_indices = @transform_7, window_bounds = array<i64: 16, 4, 16>}, {pipeline_mode = #tpu.pipeline_mode<synchronous>, transform_indices = @transform_8, window_bounds = array<i64: 1, 16>}, {pipeline_mode = #tpu.pipeline_mode<synchronous>, transform_indices = @transform_9, window_bounds = array<i64: 1, 16>}, {pipeline_mode = #tpu.pipeline_mode<synchronous>, transform_indices = @transform_10, window_bounds = array<i64: 1, 1>}, {transform_indices = @transform_11, window_bounds = array<i64: 8, 32>}, {transform_indices = @transform_12, window_bounds = array<i64: 8, 1>}]} {
    %c0 = arith.constant 0 : index
    %c0_0 = arith.constant 0 : index
    %0 = vector.load %arg2[%c0, %c0_0] : memref<8x8xf32, #tpu.memory_space<vmem>>, vector<8x8xf32>
    %c0_1 = arith.constant 0 : index
    %c0_2 = arith.constant 0 : index
    %1 = vector.load %arg3[%c0_1, %c0_2] : memref<1x8xf32, #tpu.memory_space<vmem>>, vector<1x8xf32>
    %c0_3 = arith.constant 0 : index
    %c0_4 = arith.constant 0 : index
    %2 = vector.load %arg6[%c0_3, %c0_4] : memref<8x4xf32, #tpu.memory_space<vmem>>, vector<8x4xf32>
    %c0_5 = arith.constant 0 : index
    %c0_6 = arith.constant 0 : index
    %3 = vector.load %arg7[%c0_5, %c0_6] : memref<1x4xf32, #tpu.memory_space<vmem>>, vector<1x4xf32>
    %cst = arith.constant 0.000000e+00 : f32
    %4 = vector.broadcast %cst : f32 to vector<8x32xf32>
    %cst_7 = arith.constant 0.000000e+00 : f32
    %5 = vector.broadcast %cst_7 : f32 to vector<8x16xf32>
    %c0_i32 = arith.constant 0 : i32
    %c16_i32 = arith.constant 16 : i32
    %6 = arith.addi %c0_i32, %c16_i32 : i32
    %c1_i32 = arith.constant 1 : i32
    %7:2 = scf.for %arg14 = %c0_i32 to %6 step %c1_i32 iter_args(%arg15 = %4, %arg16 = %5) -> (vector<8x32xf32>, vector<8x16xf32>)  : i32 {
      %27 = arith.index_cast %arg14 : i32 to index
      %c0_23 = arith.constant 0 : index
      %c0_24 = arith.constant 0 : index
      %28 = vector.load %arg1[%27, %c0_23, %c0_24] : memref<16x8x8xf32, #tpu.memory_space<vmem>>, vector<1x8x8xf32>
      %29 = vector.shape_cast %28 : vector<1x8x8xf32> to vector<8x8xf32>
      %cst_25 = arith.constant dense<0.000000e+00> : vector<8x8xf32>
      %30 = tpu.matmul %29, %0, %cst_25 {dimension_numbers = #tpu.dot_dimension_numbers<[1], [0], [0], [1], [0, 0, 1, 1], [], []>} : vector<8x8xf32>, vector<8x8xf32>, vector<8x8xf32> -> vector<8x8xf32>
      %31 = vector.broadcast %1 : vector<1x8xf32> to vector<8x8xf32>
      %32 = arith.addf %30, %31 : vector<8x8xf32>
      %cst_26 = arith.constant 0.000000e+00 : f32
      %33 = vector.broadcast %cst_26 : f32 to vector<8x8xf32>
      %34 = arith.maximumf %32, %33 : vector<8x8xf32>
      %cst_27 = arith.constant dense<0.000000e+00> : vector<8x4xf32>
      %35 = tpu.matmul %29, %2, %cst_27 {dimension_numbers = #tpu.dot_dimension_numbers<[1], [0], [0], [1], [0, 0, 1, 1], [], []>} : vector<8x8xf32>, vector<8x4xf32>, vector<8x4xf32> -> vector<8x4xf32>
      %36 = vector.broadcast %3 : vector<1x4xf32> to vector<8x4xf32>
      %37 = arith.addf %35, %36 : vector<8x4xf32>
      %cst_28 = arith.constant 0.000000e+00 : f32
      %38 = vector.broadcast %cst_28 : f32 to vector<8x4xf32>
      %39 = arith.maximumf %37, %38 : vector<8x4xf32>
      %40 = arith.index_cast %arg14 : i32 to index
      %c0_29 = arith.constant 0 : index
      %c0_30 = arith.constant 0 : index
      %41 = vector.load %arg4[%40, %c0_29, %c0_30] : memref<16x8x32xf32, #tpu.memory_space<vmem>>, vector<1x8x32xf32>
      %42 = vector.shape_cast %41 : vector<1x8x32xf32> to vector<8x32xf32>
      %cst_31 = arith.constant dense<0.000000e+00> : vector<8x32xf32>
      %43 = tpu.matmul %34, %42, %cst_31 {dimension_numbers = #tpu.dot_dimension_numbers<[1], [0], [0], [1], [0, 0, 1, 1], [], []>} : vector<8x8xf32>, vector<8x32xf32>, vector<8x32xf32> -> vector<8x32xf32>
      %44 = arith.addf %arg15, %43 : vector<8x32xf32>
      %45 = arith.index_cast %arg14 : i32 to index
      %c0_32 = arith.constant 0 : index
      %c0_33 = arith.constant 0 : index
      %46 = vector.load %arg8[%45, %c0_32, %c0_33] : memref<16x4x16xf32, #tpu.memory_space<vmem>>, vector<1x4x16xf32>
      %47 = vector.shape_cast %46 : vector<1x4x16xf32> to vector<4x16xf32>
      %cst_34 = arith.constant dense<0.000000e+00> : vector<8x16xf32>
      %48 = tpu.matmul %39, %47, %cst_34 {dimension_numbers = #tpu.dot_dimension_numbers<[1], [0], [0], [1], [0, 0, 1, 1], [], []>} : vector<8x4xf32>, vector<4x16xf32>, vector<8x16xf32> -> vector<8x16xf32>
      %49 = arith.addf %arg16, %48 : vector<8x16xf32>
      scf.yield %44, %49 : vector<8x32xf32>, vector<8x16xf32>
    }
    %c16_i32_8 = arith.constant 16 : i32
    %c0_9 = arith.constant 0 : index
    %c0_10 = arith.constant 0 : index
    %8 = vector.load %arg5[%c0_9, %c0_10] : memref<1x32xf32, #tpu.memory_space<vmem>>, vector<1x32xf32>
    %9 = vector.broadcast %8 : vector<1x32xf32> to vector<8x32xf32>
    %10 = arith.addf %7#0, %9 : vector<8x32xf32>
    %c0_11 = arith.constant 0 : index
    %c0_12 = arith.constant 0 : index
    %11 = vector.load %arg12[%c0_11, %c0_12] : memref<8x32xf32, #tpu.memory_space<vmem>>, vector<8x32xf32>
    tpu.vector_store %arg12[%c0_11, %c0_12], %10 {strides = array<i32>} : memref<8x32xf32, #tpu.memory_space<vmem>>, vector<8x32xf32>,
    %c0_13 = arith.constant 0 : index
    %c0_14 = arith.constant 0 : index
    %12 = vector.load %arg9[%c0_13, %c0_14] : memref<1x16xf32, #tpu.memory_space<vmem>>, vector<1x16xf32>
    %13 = vector.broadcast %12 : vector<1x16xf32> to vector<8x16xf32>
    %14 = arith.addf %7#1, %13 : vector<8x16xf32>
    %cst_15 = arith.constant 0.000000e+00 : f32
    %15 = vector.broadcast %cst_15 : f32 to vector<8x16xf32>
    %16 = arith.maximumf %14, %15 : vector<8x16xf32>
    %c0_16 = arith.constant 0 : index
    %c0_17 = arith.constant 0 : index
    %17 = vector.load %arg10[%c0_16, %c0_17] : memref<1x16xf32, #tpu.memory_space<vmem>>, vector<1x16xf32>
    %18 = vector.broadcast %17 : vector<1x16xf32> to vector<8x16xf32>
    %19 = arith.mulf %16, %18 : vector<8x16xf32>
    %cst_18 = arith.constant dense<0.000000e+00> : vector<8xf32>
    %20 = vector.multi_reduction <add>, %19, %cst_18 [1] : vector<8x16xf32> to vector<8xf32>
    %21 = vector.shape_cast %20 : vector<8xf32> to vector<8x1xf32>
    %c0_19 = arith.constant 0 : index
    %c0_20 = arith.constant 0 : index
    %22 = vector.load %arg11[%c0_19, %c0_20] : memref<1x1xf32, #tpu.memory_space<vmem>>, vector<1x1xf32>
    %23 = vector.broadcast %22 : vector<1x1xf32> to vector<8x1xf32>
    %24 = arith.addf %21, %23 : vector<8x1xf32>
    %25 = math.tanh %24 : vector<8x1xf32>
    %c0_21 = arith.constant 0 : index
    %c0_22 = arith.constant 0 : index
    %26 = vector.load %arg13[%c0_21, %c0_22] : memref<8x1xf32, #tpu.memory_space<vmem>>, vector<8x1xf32>
    tpu.vector_store %arg13[%c0_21, %c0_22], %25 {strides = array<i32>} : memref<8x1xf32, #tpu.memory_space<vmem>>, vector<8x1xf32>,
    return
  }
  func.func @transform_0(%arg0: i32) -> (i32, i32, i32) {
    %c0_i32 = arith.constant 0 : i32
    %c0_i32_0 = arith.constant 0 : i32
    %c0_i32_1 = arith.constant 0 : i32
    return %c0_i32, %arg0, %c0_i32_0 : i32, i32, i32
  }
  func.func @transform_1(%arg0: i32) -> (i32, i32) {
    %c0_i32 = arith.constant 0 : i32
    %c0_i32_0 = arith.constant 0 : i32
    %c0_i32_1 = arith.constant 0 : i32
    return %c0_i32, %c0_i32_0 : i32, i32
  }
  func.func @transform_2(%arg0: i32) -> (i32, i32) {
    %c0_i32 = arith.constant 0 : i32
    %c0_i32_0 = arith.constant 0 : i32
    %c0_i32_1 = arith.constant 0 : i32
    return %c0_i32, %c0_i32_0 : i32, i32
  }
  func.func @transform_3(%arg0: i32) -> (i32, i32, i32) {
    %c0_i32 = arith.constant 0 : i32
    %c0_i32_0 = arith.constant 0 : i32
    %c0_i32_1 = arith.constant 0 : i32
    %c0_i32_2 = arith.constant 0 : i32
    return %c0_i32, %c0_i32_0, %c0_i32_1 : i32, i32, i32
  }
  func.func @transform_4(%arg0: i32) -> (i32, i32) {
    %c0_i32 = arith.constant 0 : i32
    %c0_i32_0 = arith.constant 0 : i32
    %c0_i32_1 = arith.constant 0 : i32
    return %c0_i32, %c0_i32_0 : i32, i32
  }
  func.func @transform_5(%arg0: i32) -> (i32, i32) {
    %c0_i32 = arith.constant 0 : i32
    %c0_i32_0 = arith.constant 0 : i32
    %c0_i32_1 = arith.constant 0 : i32
    return %c0_i32, %c0_i32_0 : i32, i32
  }
  func.func @transform_6(%arg0: i32) -> (i32, i32) {
    %c0_i32 = arith.constant 0 : i32
    %c0_i32_0 = arith.constant 0 : i32
    %c0_i32_1 = arith.constant 0 : i32
    return %c0_i32, %c0_i32_0 : i32, i32
  }
  func.func @transform_7(%arg0: i32) -> (i32, i32, i32) {
    %c0_i32 = arith.constant 0 : i32
    %c0_i32_0 = arith.constant 0 : i32
    %c0_i32_1 = arith.constant 0 : i32
    %c0_i32_2 = arith.constant 0 : i32
    return %c0_i32, %c0_i32_0, %c0_i32_1 : i32, i32, i32
  }
  func.func @transform_8(%arg0: i32) -> (i32, i32) {
    %c0_i32 = arith.constant 0 : i32
    %c0_i32_0 = arith.constant 0 : i32
    %c0_i32_1 = arith.constant 0 : i32
    return %c0_i32, %c0_i32_0 : i32, i32
  }
  func.func @transform_9(%arg0: i32) -> (i32, i32) {
    %c0_i32 = arith.constant 0 : i32
    %c0_i32_0 = arith.constant 0 : i32
    %c0_i32_1 = arith.constant 0 : i32
    return %c0_i32, %c0_i32_0 : i32, i32
  }
  func.func @transform_10(%arg0: i32) -> (i32, i32) {
    %c0_i32 = arith.constant 0 : i32
    %c0_i32_0 = arith.constant 0 : i32
    %c0_i32_1 = arith.constant 0 : i32
    return %c0_i32, %c0_i32_0 : i32, i32
  }
  func.func @transform_11(%arg0: i32) -> (i32, i32) {
    %c0_i32 = arith.constant 0 : i32
    %c0_i32_0 = arith.constant 0 : i32
    return %arg0, %c0_i32 : i32, i32
  }
  func.func @transform_12(%arg0: i32) -> (i32, i32) {
    %c0_i32 = arith.constant 0 : i32
    %c0_i32_0 = arith.constant 0 : i32
    return %arg0, %c0_i32 : i32, i32
  }
}

</mosaic_0001>

<llo_original>
// kernel: tpu_custom_call.1
$region0: #{tpu_custom_call.1}
  #allocation0 [shape = 'u32[]', space=smem, size = 0x4, offset = 0x4, fixed_abs, tag = 'smem constant byte address 0x4 - core index']
  #allocation1 [shape = 'u32[144,128]{1,0:T(1,128)}', space=vmem, size = 0x12000, scoped, tag = 'internal scratch']
  #allocation2 [shape = 'f32[1,1]{1,0:T(1,128)S(1)}', space=vmem, size = 0x200, scoped, tag = 'scoped memory for tpu_custom_call.1']
  %s0 = inlined_call_operand.vmem [shape: f32[16,16,8], index: 0, kind: input, shape index: {}]
  %s1 = inlined_call_operand.vmem [shape: f32[8,8], index: 1, kind: input, shape index: {}]
  %s2 = inlined_call_operand.vmem [shape: f32[1,8], index: 2, kind: input, shape index: {}]
  %s3 = inlined_call_operand.vmem [shape: f32[16,8,32], index: 3, kind: input, shape index: {}]
  %s4 = inlined_call_operand.vmem [shape: f32[1,32], index: 4, kind: input, shape index: {}]
  %s5 = inlined_call_operand.vmem [shape: f32[8,4], index: 5, kind: input, shape index: {}]
  %s6 = inlined_call_operand.vmem [shape: f32[1,4], index: 6, kind: input, shape index: {}]
  %s7 = inlined_call_operand.vmem [shape: f32[16,4,16], index: 7, kind: input, shape index: {}]
  %s8 = inlined_call_operand.vmem [shape: f32[1,16], index: 8, kind: input, shape index: {}]
  %s9 = inlined_call_operand.vmem [shape: f32[1,16], index: 9, kind: input, shape index: {}]
  %s10 = inlined_call_operand.<no memory space> [shape: f32[1,1], index: 10, kind: input, shape index: {}]
  %s11 = inlined_call_operand.hbm [shape: f32[16,32], index: 11, kind: output, shape index: {0}]
  %s12 = inlined_call_operand.vmem [shape: f32[16,1], index: 12, kind: output, shape index: {1}]
  %13 = xla_tuple %s11, %s12
  %s14 = sld [smem:[#allocation0]]
  $region130: #{tpu_custom_call.1} parent=0
    _
  %s16 = ssub.s32 1, %s14
  %s17 = scalar_select 0, %s16, %s14
  %v18 = vstv %s10
  %19 = vst [vmem:[#allocation2] sm:$0x1] %v18
  $region1: #{tpu_custom_call.1} parent=0
    #allocation3 [shape = 'u8[131072]{0}', space=vmem, size = 0x20000, scoped, tag = 'input window, operand 0']
    #allocation4 [shape = 'u8[8192]{0}', space=vmem, size = 0x2000, scoped, tag = 'output window, operand 0']
    #allocation5 [shape = 's32[2]{0}', space=sflag, size = 0x8, scoped, tag = 'scoped memory for tpu_custom_call.1']
    %20 = vsyncpa [#allocation5], 0
    %s21 = scalar_lea.sflag [#allocation5], 1
    %22 = vsyncpa %s21, 0
    loop: start=0, step=1, limit=4
    $region2: #{tpu_custom_call.1} parent=1 // loop_pre_header
      _
    $region3: #{tpu_custom_call.1} parent=1 // loop_header
      %s24 = sphi 0, %s28
      %p25 = scmp.ge.s32.totalorder %s24, 4
      %s34 = sphi 0, %s36
      %s37 = sphi 0, %s34
      %s38 = sphi 0, %s37
      %s54 = sphi 0, %s38
      %s58 = sphi 0, %s58
      %s60 = sphi 0, %s58
      %s61 = sphi 0, %s60
      %s75 = sphi 0, %s61
      %s79 = sphi 0, %s79
      %s81 = sphi 0, %s79
      %s82 = sphi 0, %s81
      %s96 = sphi 0, %s82
      %s100 = sphi 0, %s100
      %s102 = sphi 0, %s100
      %s103 = sphi 0, %s102
      %s117 = sphi 0, %s103
      %s121 = sphi 0, %s121
      %s123 = sphi 0, %s121
      %s124 = sphi 0, %s123
      %s138 = sphi 0, %s124
      %s142 = sphi 0, %s142
      %s144 = sphi 0, %s142
      %s145 = sphi 0, %s144
      %s159 = sphi 0, %s145
      %s163 = sphi 0, %s163
      %s165 = sphi 0, %s163
      %s166 = sphi 0, %s165
      %s180 = sphi 0, %s166
      %s184 = sphi 0, %s184
      %s186 = sphi 0, %s184
      %s187 = sphi 0, %s186
      %s201 = sphi 0, %s187
      %s205 = sphi 0, %s205
      %s207 = sphi 0, %s205
      %s208 = sphi 0, %s207
      %s222 = sphi 0, %s208
      %s226 = sphi 0, %s226
      %s228 = sphi 0, %s226
      %s229 = sphi 0, %s228
      %s243 = sphi 0, %s229
      %s247 = sphi 0, %s247
      %s249 = sphi 0, %s247
      %s250 = sphi 0, %s249
      %s264 = sphi 0, %s250
      %s270 = sphi 0, %s272
      %s273 = sphi 0, %s270
      %s274 = sphi 0, %s273
      %s290 = sphi 0, %s274
      %s296 = sphi 0, %s298
      %s299 = sphi 0, %s296
      %s300 = sphi 0, %s299
      %s316 = sphi 0, %s300
    $region4: #{tpu_custom_call.1} parent=1 // loop_header_branch
      %27 = sbr.rel (%p25) target = $region8
    $region5: #{tpu_custom_call.1} parent=1 // loop_body
      %s29 = ssub.s32 %s24, 1
      %s30 = ssub.s32 %s24, 2
      %s31 = sadd.s32 %s24, 1
      %s32 = ssub.s32 %s24, %s31
      %p33 = scmp.eq.s32.totalorder %s32, 0
      %s35 = sadd.s32 %s34, 1
      %s36 = scalar_select %p33, %s34, %s35
      %p39 = pneg %p33
      %p40 = scmp.eq.s32.totalorder %s24, 1
      %p41 = por %p39, %p40
      %p42 = scmp.ne.s32.totalorder %s34, %s37
      %p43 = scmp.eq.s32.totalorder %s24, 0
      %p44 = por %p42, %p43
      %p45 = scmp.ne.s32.totalorder %s34, %s37
      %p46 = scmp.eq.s32.totalorder %s29, 1
      %p47 = por %p45, %p46
      %p48 = scmp.ne.s32.totalorder %s37, %s38
      %p49 = scmp.eq.s32.totalorder %s29, 0
      %p50 = por %p48, %p49
      %p51 = scmp.ne.s32.totalorder %s37, %s38
      %p52 = scmp.eq.s32.totalorder %s30, 1
      %p53 = por %p51, %p52
      %p55 = scmp.ne.s32.totalorder %s38, %s54
      %p56 = scmp.eq.s32.totalorder %s30, 0
      %p57 = por %p55, %p56
      %s59 = sadd.s32 %s58, 1
      %p62 = scmp.eq.s32.totalorder %s24, 1
      %p63 = scmp.ne.s32.totalorder %s58, %s60
      %p64 = scmp.eq.s32.totalorder %s24, 0
      %p65 = por %p63, %p64
      %p66 = scmp.ne.s32.totalorder %s58, %s60
      %p67 = scmp.eq.s32.totalorder %s29, 1
      %p68 = por %p66, %p67
      %p69 = scmp.ne.s32.totalorder %s60, %s61
      %p70 = scmp.eq.s32.totalorder %s29, 0
      %p71 = por %p69, %p70
      %p72 = scmp.ne.s32.totalorder %s60, %s61
      %p73 = scmp.eq.s32.totalorder %s30, 1
      %p74 = por %p72, %p73
      %p76 = scmp.ne.s32.totalorder %s61, %s75
      %p77 = scmp.eq.s32.totalorder %s30, 0
      %p78 = por %p76, %p77
      %s80 = sadd.s32 %s79, 1
      %p83 = scmp.eq.s32.totalorder %s24, 1
      %p84 = scmp.ne.s32.totalorder %s79, %s81
      %p85 = scmp.eq.s32.totalorder %s24, 0
      %p86 = por %p84, %p85
      %p87 = scmp.ne.s32.totalorder %s79, %s81
      %p88 = scmp.eq.s32.totalorder %s29, 1
      %p89 = por %p87, %p88
      %p90 = scmp.ne.s32.totalorder %s81, %s82
      %p91 = scmp.eq.s32.totalorder %s29, 0
      %p92 = por %p90, %p91
      %p93 = scmp.ne.s32.totalorder %s81, %s82
      %p94 = scmp.eq.s32.totalorder %s30, 1
      %p95 = por %p93, %p94
      %p97 = scmp.ne.s32.totalorder %s82, %s96
      %p98 = scmp.eq.s32.totalorder %s30, 0
      %p99 = por %p97, %p98
      %s101 = sadd.s32 %s100, 1
      %p104 = scmp.eq.s32.totalorder %s24, 1
      %p105 = scmp.ne.s32.totalorder %s100, %s102
      %p106 = scmp.eq.s32.totalorder %s24, 0
      %p107 = por %p105, %p106
      %p108 = scmp.ne.s32.totalorder %s100, %s102
      %p109 = scmp.eq.s32.totalorder %s29, 1
      %p110 = por %p108, %p109
      %p111 = scmp.ne.s32.totalorder %s102, %s103
      %p112 = scmp.eq.s32.totalorder %s29, 0
      %p113 = por %p111, %p112
      %p114 = scmp.ne.s32.totalorder %s102, %s103
      %p115 = scmp.eq.s32.totalorder %s30, 1
      %p116 = por %p114, %p115
      %p118 = scmp.ne.s32.totalorder %s103, %s117
      %p119 = scmp.eq.s32.totalorder %s30, 0
      %p120 = por %p118, %p119
      %s122 = sadd.s32 %s121, 1
      %p125 = scmp.eq.s32.totalorder %s24, 1
      %p126 = scmp.ne.s32.totalorder %s121, %s123
      %p127 = scmp.eq.s32.totalorder %s24, 0
      %p128 = por %p126, %p127
      %p129 = scmp.ne.s32.totalorder %s121, %s123
      %p130 = scmp.eq.s32.totalorder %s29, 1
      %p131 = por %p129, %p130
      %p132 = scmp.ne.s32.totalorder %s123, %s124
      %p133 = scmp.eq.s32.totalorder %s29, 0
      %p134 = por %p132, %p133
      %p135 = scmp.ne.s32.totalorder %s123, %s124
      %p136 = scmp.eq.s32.totalorder %s30, 1
      %p137 = por %p135, %p136
      %p139 = scmp.ne.s32.totalorder %s124, %s138
      %p140 = scmp.eq.s32.totalorder %s30, 0
      %p141 = por %p139, %p140
      %s143 = sadd.s32 %s142, 1
      %p146 = scmp.eq.s32.totalorder %s24, 1
      %p147 = scmp.ne.s32.totalorder %s142, %s144
      %p148 = scmp.eq.s32.totalorder %s24, 0
      %p149 = por %p147, %p148
      %p150 = scmp.ne.s32.totalorder %s142, %s144
      %p151 = scmp.eq.s32.totalorder %s29, 1
      %p152 = por %p150, %p151
      %p153 = scmp.ne.s32.totalorder %s144, %s145
      %p154 = scmp.eq.s32.totalorder %s29, 0
      %p155 = por %p153, %p154
      %p156 = scmp.ne.s32.totalorder %s144, %s145
      %p157 = scmp.eq.s32.totalorder %s30, 1
      %p158 = por %p156, %p157
      %p160 = scmp.ne.s32.totalorder %s145, %s159
      %p161 = scmp.eq.s32.totalorder %s30, 0
      %p162 = por %p160, %p161
      %s164 = sadd.s32 %s163, 1
      %p167 = scmp.eq.s32.totalorder %s24, 1
      %p168 = scmp.ne.s32.totalorder %s163, %s165
      %p169 = scmp.eq.s32.totalorder %s24, 0
      %p170 = por %p168, %p169
      %p171 = scmp.ne.s32.totalorder %s163, %s165
      %p172 = scmp.eq.s32.totalorder %s29, 1
      %p173 = por %p171, %p172
      %p174 = scmp.ne.s32.totalorder %s165, %s166
      %p175 = scmp.eq.s32.totalorder %s29, 0
      %p176 = por %p174, %p175
      %p177 = scmp.ne.s32.totalorder %s165, %s166
      %p178 = scmp.eq.s32.totalorder %s30, 1
      %p179 = por %p177, %p178
      %p181 = scmp.ne.s32.totalorder %s166, %s180
      %p182 = scmp.eq.s32.totalorder %s30, 0
      %p183 = por %p181, %p182
      %s185 = sadd.s32 %s184, 1
      %p188 = scmp.eq.s32.totalorder %s24, 1
      %p189 = scmp.ne.s32.totalorder %s184, %s186
      %p190 = scmp.eq.s32.totalorder %s24, 0
      %p191 = por %p189, %p190
      %p192 = scmp.ne.s32.totalorder %s184, %s186
      %p193 = scmp.eq.s32.totalorder %s29, 1
      %p194 = por %p192, %p193
      %p195 = scmp.ne.s32.totalorder %s186, %s187
      %p196 = scmp.eq.s32.totalorder %s29, 0
      %p197 = por %p195, %p196
      %p198 = scmp.ne.s32.totalorder %s186, %s187
      %p199 = scmp.eq.s32.totalorder %s30, 1
      %p200 = por %p198, %p199
      %p202 = scmp.ne.s32.totalorder %s187, %s201
      %p203 = scmp.eq.s32.totalorder %s30, 0
      %p204 = por %p202, %p203
      %s206 = sadd.s32 %s205, 1
      %p209 = scmp.eq.s32.totalorder %s24, 1
      %p210 = scmp.ne.s32.totalorder %s205, %s207
      %p211 = scmp.eq.s32.totalorder %s24, 0
      %p212 = por %p210, %p211
      %p213 = scmp.ne.s32.totalorder %s205, %s207
      %p214 = scmp.eq.s32.totalorder %s29, 1
      %p215 = por %p213, %p214
      %p216 = scmp.ne.s32.totalorder %s207, %s208
      %p217 = scmp.eq.s32.totalorder %s29, 0
      %p218 = por %p216, %p217
      %p219 = scmp.ne.s32.totalorder %s207, %s208
      %p220 = scmp.eq.s32.totalorder %s30, 1
      %p221 = por %p219, %p220
      %p223 = scmp.ne.s32.totalorder %s208, %s222
      %p224 = scmp.eq.s32.totalorder %s30, 0
      %p225 = por %p223, %p224
      %s227 = sadd.s32 %s226, 1
      %p230 = scmp.eq.s32.totalorder %s24, 1
      %p231 = scmp.ne.s32.totalorder %s226, %s228
      %p232 = scmp.eq.s32.totalorder %s24, 0
      %p233 = por %p231, %p232
      %p234 = scmp.ne.s32.totalorder %s226, %s228
      %p235 = scmp.eq.s32.totalorder %s29, 1
      %p236 = por %p234, %p235
      %p237 = scmp.ne.s32.totalorder %s228, %s229
      %p238 = scmp.eq.s32.totalorder %s29, 0
      %p239 = por %p237, %p238
      %p240 = scmp.ne.s32.totalorder %s228, %s229
      %p241 = scmp.eq.s32.totalorder %s30, 1
      %p242 = por %p240, %p241
      %p244 = scmp.ne.s32.totalorder %s229, %s243
      %p245 = scmp.eq.s32.totalorder %s30, 0
      %p246 = por %p244, %p245
      %s248 = sadd.s32 %s247, 1
      %p251 = scmp.eq.s32.totalorder %s24, 1
      %p252 = scmp.ne.s32.totalorder %s247, %s249
      %p253 = scmp.eq.s32.totalorder %s24, 0
      %p254 = por %p252, %p253
      %p255 = scmp.ne.s32.totalorder %s247, %s249
      %p256 = scmp.eq.s32.totalorder %s29, 1
      %p257 = por %p255, %p256
      %p258 = scmp.ne.s32.totalorder %s249, %s250
      %p259 = scmp.eq.s32.totalorder %s29, 0
      %p260 = por %p258, %p259
      %p261 = scmp.ne.s32.totalorder %s249, %s250
      %p262 = scmp.eq.s32.totalorder %s30, 1
      %p263 = por %p261, %p262
      %p265 = scmp.ne.s32.totalorder %s250, %s264
      %p266 = scmp.eq.s32.totalorder %s30, 0
      %p267 = por %p265, %p266
      %s268 = ssub.s32 %s24, %s31
      %p269 = scmp.eq.s32.totalorder %s268, 0
      %s271 = sadd.s32 %s270, 1
      %s272 = scalar_select %p269, %s270, %s271
      %p275 = pneg %p269
      %p276 = scmp.eq.s32.totalorder %s24, 1
      %p277 = por %p275, %p276
      %p278 = scmp.ne.s32.totalorder %s270, %s273
      %p279 = scmp.eq.s32.totalorder %s24, 0
      %p280 = por %p278, %p279
      %p281 = scmp.ne.s32.totalorder %s270, %s273
      %p282 = scmp.eq.s32.totalorder %s29, 1
      %p283 = por %p281, %p282
      %p284 = scmp.ne.s32.totalorder %s273, %s274
      %p285 = scmp.eq.s32.totalorder %s29, 0
      %p286 = por %p284, %p285
      %p287 = scmp.ne.s32.totalorder %s273, %s274
      %p288 = scmp.eq.s32.totalorder %s30, 1
      %p289 = por %p287, %p288
      %p291 = scmp.ne.s32.totalorder %s274, %s290
      %p292 = scmp.eq.s32.totalorder %s30, 0
      %p293 = por %p291, %p292
      %s294 = ssub.s32 %s24, %s31
      %p295 = scmp.eq.s32.totalorder %s294, 0
      %s297 = sadd.s32 %s296, 1
      %s298 = scalar_select %p295, %s296, %s297
      %p301 = pneg %p295
      %p302 = scmp.eq.s32.totalorder %s24, 1
      %p303 = por %p301, %p302
      %p304 = scmp.ne.s32.totalorder %s296, %s299
      %p305 = scmp.eq.s32.totalorder %s24, 0
      %p306 = por %p304, %p305
      %p307 = scmp.ne.s32.totalorder %s296, %s299
      %p308 = scmp.eq.s32.totalorder %s29, 1
      %p309 = por %p307, %p308
      %p310 = scmp.ne.s32.totalorder %s299, %s300
      %p311 = scmp.eq.s32.totalorder %s29, 0
      %p312 = por %p310, %p311
      %p313 = scmp.ne.s32.totalorder %s299, %s300
      %p314 = scmp.eq.s32.totalorder %s30, 1
      %p315 = por %p313, %p314
      %p317 = scmp.ne.s32.totalorder %s300, %s316
      %p318 = scmp.eq.s32.totalorder %s30, 0
      %p319 = por %p317, %p318
      %p320 = scmp.le.s32.totalorder 1, %s24
      %p321 = scmp.lt.s32.totalorder %s24, 3
      %p322 = pnand %p320, %p321
      %p323 = pneg %p322
      // Predicated region
      $region9: #{tpu_custom_call.1} parent=5 // pred_check
        _
      $region10: #{tpu_custom_call.1} parent=5 // pred_check_branch
        %325 = sbr.rel (%p322) target = $region12
      $region11: #{tpu_custom_call.1} parent=5 // pred_region
        %s326 = ssub.s32 %s24, 1
        // Predicated region
        $region13: #{tpu_custom_call.1} parent=11 // pred_check
          %p327 = pneg %p71
        $region14: #{tpu_custom_call.1} parent=11 // pred_check_branch
          %329 = sbr.rel (%p327) target = $region16
        $region15: #{tpu_custom_call.1} parent=11 // pred_region
          _
        $region16: #{tpu_custom_call.1} parent=11 // pred_fallthru
          _
        // Predicated region
        $region17: #{tpu_custom_call.1} parent=11 // pred_check
          %p330 = pneg %p92
        $region18: #{tpu_custom_call.1} parent=11 // pred_check_branch
          %332 = sbr.rel (%p330) target = $region20
        $region19: #{tpu_custom_call.1} parent=11 // pred_region
          _
        $region20: #{tpu_custom_call.1} parent=11 // pred_fallthru
          _
        // Predicated region
        $region21: #{tpu_custom_call.1} parent=11 // pred_check
          %p333 = pneg %p113
        $region22: #{tpu_custom_call.1} parent=11 // pred_check_branch
          %335 = sbr.rel (%p333) target = $region24
        $region23: #{tpu_custom_call.1} parent=11 // pred_region
          _
        $region24: #{tpu_custom_call.1} parent=11 // pred_fallthru
          _
        // Predicated region
        $region25: #{tpu_custom_call.1} parent=11 // pred_check
          %p336 = pneg %p134
        $region26: #{tpu_custom_call.1} parent=11 // pred_check_branch
          %338 = sbr.rel (%p336) target = $region28
        $region27: #{tpu_custom_call.1} parent=11 // pred_region
          _
        $region28: #{tpu_custom_call.1} parent=11 // pred_fallthru
          _
        // Predicated region
        $region29: #{tpu_custom_call.1} parent=11 // pred_check
          %p339 = pneg %p155
        $region30: #{tpu_custom_call.1} parent=11 // pred_check_branch
          %341 = sbr.rel (%p339) target = $region32
        $region31: #{tpu_custom_call.1} parent=11 // pred_region
          _
        $region32: #{tpu_custom_call.1} parent=11 // pred_fallthru
          _
        // Predicated region
        $region33: #{tpu_custom_call.1} parent=11 // pred_check
          %p342 = pneg %p176
        $region34: #{tpu_custom_call.1} parent=11 // pred_check_branch
          %344 = sbr.rel (%p342) target = $region36
        $region35: #{tpu_custom_call.1} parent=11 // pred_region
          _
        $region36: #{tpu_custom_call.1} parent=11 // pred_fallthru
          _
        // Predicated region
        $region37: #{tpu_custom_call.1} parent=11 // pred_check
          %p345 = pneg %p197
        $region38: #{tpu_custom_call.1} parent=11 // pred_check_branch
          %347 = sbr.rel (%p345) target = $region40
        $region39: #{tpu_custom_call.1} parent=11 // pred_region
          _
        $region40: #{tpu_custom_call.1} parent=11 // pred_fallthru
          _
        // Predicated region
        $region41: #{tpu_custom_call.1} parent=11 // pred_check
          %p348 = pneg %p218
        $region42: #{tpu_custom_call.1} parent=11 // pred_check_branch
          %350 = sbr.rel (%p348) target = $region44
        $region43: #{tpu_custom_call.1} parent=11 // pred_region
          _
        $region44: #{tpu_custom_call.1} parent=11 // pred_fallthru
          _
        // Predicated region
        $region45: #{tpu_custom_call.1} parent=11 // pred_check
          %p351 = pneg %p239
        $region46: #{tpu_custom_call.1} parent=11 // pred_check_branch
          %353 = sbr.rel (%p351) target = $region48
        $region47: #{tpu_custom_call.1} parent=11 // pred_region
          _
        $region48: #{tpu_custom_call.1} parent=11 // pred_fallthru
          _
        // Predicated region
        $region49: #{tpu_custom_call.1} parent=11 // pred_check
          %p354 = pneg %p260
        $region50: #{tpu_custom_call.1} parent=11 // pred_check_branch
          %356 = sbr.rel (%p354) target = $region52
        $region51: #{tpu_custom_call.1} parent=11 // pred_region
          _
        $region52: #{tpu_custom_call.1} parent=11 // pred_fallthru
          _
      $region12: #{tpu_custom_call.1} parent=5 // pred_fallthru
        _
      %p357 = scmp.lt.s32.totalorder %s24, 2
      // Predicated region
      $region53: #{tpu_custom_call.1} parent=5 // pred_check
        %p358 = pneg %p357
      $region54: #{tpu_custom_call.1} parent=5 // pred_check_branch
        %360 = sbr.rel (%p358) target = $region56
      $region55: #{tpu_custom_call.1} parent=5 // pred_region
        // Predicated region
        $region57: #{tpu_custom_call.1} parent=55 // pred_check
          %p361 = pneg %p44
        $region58: #{tpu_custom_call.1} parent=55 // pred_check_branch
          %363 = sbr.rel (%p361) target = $region60
        $region59: #{tpu_custom_call.1} parent=55 // pred_region
          %s364 = sand.u32 %s34, 1
          %s365 = sand.u32 %s34, 1
          %s366 = smul.addr %s365, 128
          %s367 = scalar_lea.vmem [#allocation3], %s366
          %s368 = smul.addr %s24, 8
          %s369 = scalar_lea.vmem %s0, %s368
          // Predicated region
          $region61: #{tpu_custom_call.1} parent=59 // pred_check
            _
          $region62: #{tpu_custom_call.1} parent=59 // pred_check_branch
            %371 = sbr.rel (0) target = $region64
          $region63: #{tpu_custom_call.1} parent=59 // pred_region
            // Predicated region
            $region65: #{tpu_custom_call.1} parent=63 // pred_check
              _
            $region66: #{tpu_custom_call.1} parent=63 // pred_check_branch
              %373 = sbr.rel (0) target = $region68
            $region67: #{tpu_custom_call.1} parent=63 // pred_region
              // Predicated region
              $region80: #{tpu_custom_call.1} parent=67 // pred_check
                _
              $region81: #{tpu_custom_call.1} parent=67 // pred_check_branch
                %419 = sbr.rel (0) target = $region83
              $region82: #{tpu_custom_call.1} parent=67 // pred_region
                loop: start=0, step=1, limit=1
                $region84: #{tpu_custom_call.1} parent=82 // loop_pre_header
                  _
                $region85: #{tpu_custom_call.1} parent=82 // loop_header
                  %s421 = sphi 0, %s425
                  %p422 = scmp.ge.s32.totalorder %s421, 1
                  %s426 = sphi %s369, %s369
                  %s427 = sphi %s367, %s367
                $region86: #{tpu_custom_call.1} parent=82 // loop_header_branch
                  %424 = sbr.rel (%p422) target = $region90
                $region87: #{tpu_custom_call.1} parent=82 // loop_body
                  %v428 = vld [vmem:[%s426] sm:$0xff]
                  %429 = vst [vmem:[%s427] sm:$0xff] %v428
                  %v430 = vld [vmem:[%s426 + $0x10] sm:$0xff]
                  %431 = vst [vmem:[%s427 + $0x8] sm:$0xff] %v430
                  %v432 = vld [vmem:[%s426 + $0x20] sm:$0xff]
                  %433 = vst [vmem:[%s427 + $0x10] sm:$0xff] %v432
                  %v434 = vld [vmem:[%s426 + $0x30] sm:$0xff]
                  %435 = vst [vmem:[%s427 + $0x18] sm:$0xff] %v434
                  %v436 = vld [vmem:[%s426 + $0x40] sm:$0xff]
                  %437 = vst [vmem:[%s427 + $0x20] sm:$0xff] %v436
                  %v438 = vld [vmem:[%s426 + $0x50] sm:$0xff]
                  %439 = vst [vmem:[%s427 + $0x28] sm:$0xff] %v438
                  %v440 = vld [vmem:[%s426 + $0x60] sm:$0xff]
                  %441 = vst [vmem:[%s427 + $0x30] sm:$0xff] %v440
                  %v442 = vld [vmem:[%s426 + $0x70] sm:$0xff]
                  %443 = vst [vmem:[%s427 + $0x38] sm:$0xff] %v442
                  %v444 = vld [vmem:[%s426 + $0x80] sm:$0xff]
                  %445 = vst [vmem:[%s427 + $0x40] sm:$0xff] %v444
                  %v446 = vld [vmem:[%s426 + $0x90] sm:$0xff]
                  %447 = vst [vmem:[%s427 + $0x48] sm:$0xff] %v446
                  %v448 = vld [vmem:[%s426 + $0xa0] sm:$0xff]
                  %449 = vst [vmem:[%s427 + $0x50] sm:$0xff] %v448
                  %v450 = vld [vmem:[%s426 + $0xb0] sm:$0xff]
                  %451 = vst [vmem:[%s427 + $0x58] sm:$0xff] %v450
                  %v452 = vld [vmem:[%s426 + $0xc0] sm:$0xff]
                  %453 = vst [vmem:[%s427 + $0x60] sm:$0xff] %v452
                  %v454 = vld [vmem:[%s426 + $0xd0] sm:$0xff]
                  %455 = vst [vmem:[%s427 + $0x68] sm:$0xff] %v454
                  %v456 = vld [vmem:[%s426 + $0xe0] sm:$0xff]
                  %457 = vst [vmem:[%s427 + $0x70] sm:$0xff] %v456
                  %v458 = vld [vmem:[%s426 + $0xf0] sm:$0xff]
                  %459 = vst [vmem:[%s427 + $0x78] sm:$0xff] %v458
                $region88: #{tpu_custom_call.1} parent=82 // loop_footer
                  %s425 = sadd.s32 1, %s421
                $region89: #{tpu_custom_call.1} parent=82 // loop_footer_branch
                  %420 = sbr.rel target = $region85
                $region90: #{tpu_custom_call.1} parent=82 // loop_exit
                  _
              $region83: #{tpu_custom_call.1} parent=67 // pred_fallthru
                _
              // Predicated region
              $region91: #{tpu_custom_call.1} parent=67 // pred_check
                _
              $region92: #{tpu_custom_call.1} parent=67 // pred_check_branch
                %461 = sbr.rel target = $region94
              $region93: #{tpu_custom_call.1} parent=67 // pred_region
                _
              $region94: #{tpu_custom_call.1} parent=67 // pred_fallthru
                _
            $region68: #{tpu_custom_call.1} parent=63 // pred_fallthru
              _
            // Predicated region
            $region69: #{tpu_custom_call.1} parent=63 // pred_check
              _
            $region70: #{tpu_custom_call.1} parent=63 // pred_check_branch
              %375 = sbr.rel target = $region72
            $region71: #{tpu_custom_call.1} parent=63 // pred_region
              %s377 = ssub.s32 256, 1
              loop: start=0, step=1, limit=1
              $region73: #{tpu_custom_call.1} parent=71 // loop_pre_header
                _
              $region74: #{tpu_custom_call.1} parent=71 // loop_header
                %s379 = sphi 0, %s383
                %p380 = scmp.ge.s32.totalorder %s379, 1
                %s384 = sphi %s369, %s369
                %s385 = sphi %s367, %s367
              $region75: #{tpu_custom_call.1} parent=71 // loop_header_branch
                %382 = sbr.rel (%p380) target = $region79
              $region76: #{tpu_custom_call.1} parent=71 // loop_body
                %v386 = vld [vmem:[%s384] sm:%s377]
                %387 = vst [vmem:[%s385] sm:%s377] %v386
                %v388 = vld [vmem:[%s384 + $0x10] sm:%s377]
                %389 = vst [vmem:[%s385 + $0x8] sm:%s377] %v388
                %v390 = vld [vmem:[%s384 + $0x20] sm:%s377]
                %391 = vst [vmem:[%s385 + $0x10] sm:%s377] %v390
                %v392 = vld [vmem:[%s384 + $0x30] sm:%s377]
                %393 = vst [vmem:[%s385 + $0x18] sm:%s377] %v392
                %v394 = vld [vmem:[%s384 + $0x40] sm:%s377]
                %395 = vst [vmem:[%s385 + $0x20] sm:%s377] %v394
                %v396 = vld [vmem:[%s384 + $0x50] sm:%s377]
                %397 = vst [vmem:[%s385 + $0x28] sm:%s377] %v396
                %v398 = vld [vmem:[%s384 + $0x60] sm:%s377]
                %399 = vst [vmem:[%s385 + $0x30] sm:%s377] %v398
                %v400 = vld [vmem:[%s384 + $0x70] sm:%s377]
                %401 = vst [vmem:[%s385 + $0x38] sm:%s377] %v400
                %v402 = vld [vmem:[%s384 + $0x80] sm:%s377]
                %403 = vst [vmem:[%s385 + $0x40] sm:%s377] %v402
                %v404 = vld [vmem:[%s384 + $0x90] sm:%s377]
                %405 = vst [vmem:[%s385 + $0x48] sm:%s377] %v404
                %v406 = vld [vmem:[%s384 + $0xa0] sm:%s377]
                %407 = vst [vmem:[%s385 + $0x50] sm:%s377] %v406
                %v408 = vld [vmem:[%s384 + $0xb0] sm:%s377]
                %409 = vst [vmem:[%s385 + $0x58] sm:%s377] %v408
                %v410 = vld [vmem:[%s384 + $0xc0] sm:%s377]
                %411 = vst [vmem:[%s385 + $0x60] sm:%s377] %v410
                %v412 = vld [vmem:[%s384 + $0xd0] sm:%s377]
                %413 = vst [vmem:[%s385 + $0x68] sm:%s377] %v412
                %v414 = vld [vmem:[%s384 + $0xe0] sm:%s377]
                %415 = vst [vmem:[%s385 + $0x70] sm:%s377] %v414
                %v416 = vld [vmem:[%s384 + $0xf0] sm:%s377]
                %417 = vst [vmem:[%s385 + $0x78] sm:%s377] %v416
              $region77: #{tpu_custom_call.1} parent=71 // loop_footer
                %s383 = sadd.s32 1, %s379
              $region78: #{tpu_custom_call.1} parent=71 // loop_footer_branch
                %378 = sbr.rel target = $region74
              $region79: #{tpu_custom_call.1} parent=71 // loop_exit
                _
            $region72: #{tpu_custom_call.1} parent=63 // pred_fallthru
              _
          $region64: #{tpu_custom_call.1} parent=59 // pred_fallthru
            _
          %462 = vnop
        $region60: #{tpu_custom_call.1} parent=55 // pred_fallthru
          _
      $region56: #{tpu_custom_call.1} parent=5 // pred_fallthru
        _
      %p463 = scmp.le.s32.totalorder 1, %s24
      %p464 = scmp.lt.s32.totalorder %s24, 3
      %p465 = pnand %p463, %p464
      %p466 = pneg %p465
      // Predicated region
      $region95: #{tpu_custom_call.1} parent=5 // pred_check
        _
      $region96: #{tpu_custom_call.1} parent=5 // pred_check_branch
        %468 = sbr.rel (%p465) target = $region98
      $region97: #{tpu_custom_call.1} parent=5 // pred_region
        %s469 = ssub.s32 %s24, 1
        %s470 = sand.u32 %s37, 1
        %s471 = sand.u32 %s37, 1
        %s472 = smul.addr %s471, 128
        %s473 = scalar_lea.vmem [#allocation3], %s472
        // Predicated region
        $region99: #{tpu_custom_call.1} parent=97 // pred_check
          %p474 = pneg %p50
        $region100: #{tpu_custom_call.1} parent=97 // pred_check_branch
          %476 = sbr.rel (%p474) target = $region102
        $region101: #{tpu_custom_call.1} parent=97 // pred_region
          _
        $region102: #{tpu_custom_call.1} parent=97 // pred_fallthru
          _
        %s477 = sand.u32 %s37, 1
        %s478 = sand.u32 %s37, 1
        %s479 = smul.addr %s478, 128
        %s480 = scalar_lea.vmem [#allocation3], %s479
        %p481 = pneg %p50
        %p482 = pneg %p47
        %p483 = pneg %p71
        %p484 = pneg %p68
        %p485 = pneg %p92
        %p486 = pneg %p89
        %p487 = pneg %p113
        %p488 = pneg %p110
        %p489 = pneg %p134
        %p490 = pneg %p131
        %p491 = pneg %p155
        %p492 = pneg %p152
        %p493 = pneg %p176
        %p494 = pneg %p173
        %p495 = pneg %p197
        %p496 = pneg %p194
        %p497 = pneg %p218
        %p498 = pneg %p215
        %p499 = pneg %p239
        %p500 = pneg %p236
        %p501 = pneg %p260
        %p502 = pneg %p257
        %p503 = pneg %p286
        %p504 = pneg %p283
        %s505 = sand.u32 %s273, 1
        %s506 = scalar_lea.sflag [#allocation5], %s505
        %s507 = sand.u32 %s273, 1
        %s508 = smul.addr %s507, 8
        %s509 = scalar_lea.vmem [#allocation4], %s508
        %p510 = pneg %p312
        %p511 = pneg %p309
        %p512 = scmp.lt.s32.totalorder %s29, 1
        %s513 = scalar_select %p512, %s29, 1
        %s514 = smul.addr %s513, 8
        %s515 = scalar_lea.vmem %s12, %s514
        %p516 = scmp.lt.s32.totalorder %s29, 1
        %s517 = scalar_select %p516, %s29, 1
        %s518 = smul.addr %s517, 8
        %s519 = scalar_lea.vmem %s12, %s518
        %v520 = vld [vmem:[%s1] sm:$0xff]
        %v521 = vld [vmem:[%s2] sm:$0x1]
        %v522 = vld [vmem:[%s5] sm:$0xff]
        %v523 = vld [vmem:[%s6] sm:$0x1]
        loop: start=0, step=1, limit=16
        $region103: #{tpu_custom_call.1} parent=97 // loop_pre_header
          _
        $region104: #{tpu_custom_call.1} parent=97 // loop_header
          %s525 = sphi 0, %s529
          %p526 = scmp.ge.s32.totalorder %s525, 16
          %v530 = vphi 0.0, %v768
          %v531 = vphi 0.0, %v850
        $region105: #{tpu_custom_call.1} parent=97 // loop_header_branch
          %528 = sbr.rel (%p526) target = $region109
        $region106: #{tpu_custom_call.1} parent=97 // loop_body
          %s532 = smul.u32 %s525, 8
          %s533 = scalar_lea.vmem %s473, %s532 [#allocation3]
          %v534 = vld [vmem:[%s533] sm:$0xff]
          %v536 = vlaneseq
          %v537 = vshrl.u32 %v536, 7
          %v538 = vsub.s32 0, %v537
          %v539 = vrot.slane %v521, %v538
          %vm541 = vcmask 64512
          %v543 = vsel %vm541, %v534, 0
          %545 = vmatprep.subr.mxu0 0.0
          %546 = vmatpush1.msra.mxu0 0.0
          %547 = vmatprep.subr.mxu0 0.0
          %548 = vmatpush1.msra.mxu0 0.0
          %549 = vmatprep.subr.mxu0 0.0
          %550 = vmatpush1.msra.mxu0 0.0
          %551 = vmatprep.subr.mxu0 0.0
          %552 = vmatpush1.msra.mxu0 0.0
          %553 = vmatprep.subr.mxu0 0.0
          %554 = vmatpush1.msra.mxu0 0.0
          %555 = vmatprep.subr.mxu0 0.0
          %556 = vmatpush1.msra.mxu0 0.0
          %557 = vmatprep.subr.mxu0 0.0
          %558 = vmatpush1.msra.mxu0 0.0
          %559 = vmatprep.subr.mxu0 0.0
          %560 = vmatpush1.msra.mxu0 0.0
          %561 = vmatprep.subr.mxu0 0.0
          %562 = vmatpush1.msra.mxu0 0.0
          %563 = vmatprep.subr.mxu0 0.0
          %564 = vmatpush1.msra.mxu0 0.0
          %565 = vmatprep.subr.mxu0 0.0
          %566 = vmatpush1.msra.mxu0 0.0
          %567 = vmatprep.subr.mxu0 0.0
          %568 = vmatpush1.msra.mxu0 0.0
          %569 = vmatprep.subr.mxu0 0.0
          %570 = vmatpush1.msra.mxu0 0.0
          %571 = vmatprep.subr.mxu0 0.0
          %572 = vmatpush1.msra.mxu0 0.0
          %573 = vmatprep.subr.mxu0 0.0
          %574 = vmatpush1.msra.mxu0 0.0
          %575 = vmatprep.subr.mxu0 0.0
          %576 = vmatpush1.msra.mxu0 %v520
          %577 = vmatprep.subr.mxu0 0.0
          %578 = vmatpush2.msra.mxu0 0.0
          %579 = vmatprep.subr.mxu0 0.0
          %580 = vmatpush2.msra.mxu0 0.0
          %581 = vmatprep.subr.mxu0 0.0
          %582 = vmatpush2.msra.mxu0 0.0
          %583 = vmatprep.subr.mxu0 0.0
          %584 = vmatpush2.msra.mxu0 0.0
          %585 = vmatprep.subr.mxu0 0.0
          %586 = vmatpush2.msra.mxu0 0.0
          %587 = vmatprep.subr.mxu0 0.0
          %588 = vmatpush2.msra.mxu0 0.0
          %589 = vmatprep.subr.mxu0 0.0
          %590 = vmatpush2.msra.mxu0 0.0
          %591 = vmatprep.subr.mxu0 0.0
          %592 = vmatpush2.msra.mxu0 0.0
          %593 = vmatprep.subr.mxu0 0.0
          %594 = vmatpush2.msra.mxu0 0.0
          %595 = vmatprep.subr.mxu0 0.0
          %596 = vmatpush2.msra.mxu0 0.0
          %597 = vmatprep.subr.mxu0 0.0
          %598 = vmatpush2.msra.mxu0 0.0
          %599 = vmatprep.subr.mxu0 0.0
          %600 = vmatpush2.msra.mxu0 0.0
          %601 = vmatprep.subr.mxu0 0.0
          %602 = vmatpush2.msra.mxu0 0.0
          %603 = vmatprep.subr.mxu0 0.0
          %604 = vmatpush2.msra.mxu0 0.0
          %605 = vmatprep.subr.mxu0 0.0
          %606 = vmatpush2.msra.mxu0 0.0
          %607 = vmatprep.subr.mxu0 0.0
          %608 = vmatpush2.msra.mxu0 0.0
          %609 = vmatprep.mubr.f32.mxu0 0.0
          %610 = vmatmul.mubr.f32.gmra.mxu0 %v543
          %v611 = vpop.f32.mrf.mxu0
          %v612 = vadd.f32 %v539, %v611
          %v613 = vpop.f32.mrf.mxu0
          %614 = vdwg.mxu0
          %v615 = vmax.f32 %v612, 0.0
          %v617 = vlaneseq
          %v618 = vshrl.u32 %v617, 7
          %v619 = vsub.s32 0, %v618
          %v620 = vrot.slane %v523, %v619
          %622 = vmatprep.subr.mxu0 0.0
          %623 = vmatpush1.msra.mxu0 0.0
          %624 = vmatprep.subr.mxu0 0.0
          %625 = vmatpush1.msra.mxu0 0.0
          %626 = vmatprep.subr.mxu0 0.0
          %627 = vmatpush1.msra.mxu0 0.0
          %628 = vmatprep.subr.mxu0 0.0
          %629 = vmatpush1.msra.mxu0 0.0
          %630 = vmatprep.subr.mxu0 0.0
          %631 = vmatpush1.msra.mxu0 0.0
          %632 = vmatprep.subr.mxu0 0.0
          %633 = vmatpush1.msra.mxu0 0.0
          %634 = vmatprep.subr.mxu0 0.0
          %635 = vmatpush1.msra.mxu0 0.0
          %636 = vmatprep.subr.mxu0 0.0
          %637 = vmatpush1.msra.mxu0 0.0
          %638 = vmatprep.subr.mxu0 0.0
          %639 = vmatpush1.msra.mxu0 0.0
          %640 = vmatprep.subr.mxu0 0.0
          %641 = vmatpush1.msra.mxu0 0.0
          %642 = vmatprep.subr.mxu0 0.0
          %643 = vmatpush1.msra.mxu0 0.0
          %644 = vmatprep.subr.mxu0 0.0
          %645 = vmatpush1.msra.mxu0 0.0
          %646 = vmatprep.subr.mxu0 0.0
          %647 = vmatpush1.msra.mxu0 0.0
          %648 = vmatprep.subr.mxu0 0.0
          %649 = vmatpush1.msra.mxu0 0.0
          %650 = vmatprep.subr.mxu0 0.0
          %651 = vmatpush1.msra.mxu0 0.0
          %652 = vmatprep.subr.mxu0 0.0
          %653 = vmatpush1.msra.mxu0 %v522
          %654 = vmatprep.subr.mxu0 0.0
          %655 = vmatpush2.msra.mxu0 0.0
          %656 = vmatprep.subr.mxu0 0.0
          %657 = vmatpush2.msra.mxu0 0.0
          %658 = vmatprep.subr.mxu0 0.0
          %659 = vmatpush2.msra.mxu0 0.0
          %660 = vmatprep.subr.mxu0 0.0
          %661 = vmatpush2.msra.mxu0 0.0
          %662 = vmatprep.subr.mxu0 0.0
          %663 = vmatpush2.msra.mxu0 0.0
          %664 = vmatprep.subr.mxu0 0.0
          %665 = vmatpush2.msra.mxu0 0.0
          %666 = vmatprep.subr.mxu0 0.0
          %667 = vmatpush2.msra.mxu0 0.0
          %668 = vmatprep.subr.mxu0 0.0
          %669 = vmatpush2.msra.mxu0 0.0
          %670 = vmatprep.subr.mxu0 0.0
          %671 = vmatpush2.msra.mxu0 0.0
          %672 = vmatprep.subr.mxu0 0.0
          %673 = vmatpush2.msra.mxu0 0.0
          %674 = vmatprep.subr.mxu0 0.0
          %675 = vmatpush2.msra.mxu0 0.0
          %676 = vmatprep.subr.mxu0 0.0
          %677 = vmatpush2.msra.mxu0 0.0
          %678 = vmatprep.subr.mxu0 0.0
          %679 = vmatpush2.msra.mxu0 0.0
          %680 = vmatprep.subr.mxu0 0.0
          %681 = vmatpush2.msra.mxu0 0.0
          %682 = vmatprep.subr.mxu0 0.0
          %683 = vmatpush2.msra.mxu0 0.0
          %684 = vmatprep.subr.mxu0 0.0
          %685 = vmatpush2.msra.mxu0 0.0
          %686 = vmatprep.mubr.f32.mxu0 0.0
          %687 = vmatmul.mubr.f32.gmra.mxu0 %v543
          %v688 = vpop.f32.mrf.mxu0
          %v689 = vadd.f32 %v620, %v688
          %v690 = vpop.f32.mrf.mxu0
          %691 = vdwg.mxu0
          %v692 = vmax.f32 %v689, 0.0
          %s693 = scalar_lea.vmem %s3, %s532
          %v694 = vld [vmem:[%s693] sm:$0xff]
          %v696 = vsel %vm541, %v615, 0
          %698 = vmatprep.subr.mxu0 0.0
          %699 = vmatpush1.msra.mxu0 0.0
          %700 = vmatprep.subr.mxu0 0.0
          %701 = vmatpush1.msra.mxu0 0.0
          %702 = vmatprep.subr.mxu0 0.0
          %703 = vmatpush1.msra.mxu0 0.0
          %704 = vmatprep.subr.mxu0 0.0
          %705 = vmatpush1.msra.mxu0 0.0
          %706 = vmatprep.subr.mxu0 0.0
          %707 = vmatpush1.msra.mxu0 0.0
          %708 = vmatprep.subr.mxu0 0.0
          %709 = vmatpush1.msra.mxu0 0.0
          %710 = vmatprep.subr.mxu0 0.0
          %711 = vmatpush1.msra.mxu0 0.0
          %712 = vmatprep.subr.mxu0 0.0
          %713 = vmatpush1.msra.mxu0 0.0
          %714 = vmatprep.subr.mxu0 0.0
          %715 = vmatpush1.msra.mxu0 0.0
          %716 = vmatprep.subr.mxu0 0.0
          %717 = vmatpush1.msra.mxu0 0.0
          %718 = vmatprep.subr.mxu0 0.0
          %719 = vmatpush1.msra.mxu0 0.0
          %720 = vmatprep.subr.mxu0 0.0
          %721 = vmatpush1.msra.mxu0 0.0
          %722 = vmatprep.subr.mxu0 0.0
          %723 = vmatpush1.msra.mxu0 0.0
          %724 = vmatprep.subr.mxu0 0.0
          %725 = vmatpush1.msra.mxu0 0.0
          %726 = vmatprep.subr.mxu0 0.0
          %727 = vmatpush1.msra.mxu0 0.0
          %728 = vmatprep.subr.mxu0 0.0
          %729 = vmatpush1.msra.mxu0 %v694
          %730 = vmatprep.subr.mxu0 0.0
          %731 = vmatpush2.msra.mxu0 0.0
          %732 = vmatprep.subr.mxu0 0.0
          %733 = vmatpush2.msra.mxu0 0.0
          %734 = vmatprep.subr.mxu0 0.0
          %735 = vmatpush2.msra.mxu0 0.0
          %736 = vmatprep.subr.mxu0 0.0
          %737 = vmatpush2.msra.mxu0 0.0
          %738 = vmatprep.subr.mxu0 0.0
          %739 = vmatpush2.msra.mxu0 0.0
          %740 = vmatprep.subr.mxu0 0.0
          %741 = vmatpush2.msra.mxu0 0.0
          %742 = vmatprep.subr.mxu0 0.0
          %743 = vmatpush2.msra.mxu0 0.0
          %744 = vmatprep.subr.mxu0 0.0
          %745 = vmatpush2.msra.mxu0 0.0
          %746 = vmatprep.subr.mxu0 0.0
          %747 = vmatpush2.msra.mxu0 0.0
          %748 = vmatprep.subr.mxu0 0.0
          %749 = vmatpush2.msra.mxu0 0.0
          %750 = vmatprep.subr.mxu0 0.0
          %751 = vmatpush2.msra.mxu0 0.0
          %752 = vmatprep.subr.mxu0 0.0
          %753 = vmatpush2.msra.mxu0 0.0
          %754 = vmatprep.subr.mxu0 0.0
          %755 = vmatpush2.msra.mxu0 0.0
          %756 = vmatprep.subr.mxu0 0.0
          %757 = vmatpush2.msra.mxu0 0.0
          %758 = vmatprep.subr.mxu0 0.0
          %759 = vmatpush2.msra.mxu0 0.0
          %760 = vmatprep.subr.mxu0 0.0
          %761 = vmatpush2.msra.mxu0 0.0
          %762 = vmatprep.mubr.f32.mxu0 0.0
          %763 = vmatmul.mubr.f32.gmra.mxu0 %v696
          %v764 = vpop.f32.mrf.mxu0
          %v765 = vadd.f32 0.0, %v764
          %v766 = vpop.f32.mrf.mxu0
          %767 = vdwg.mxu0
          %v768 = vadd.f32 %v530, %v765
          %s769 = smul.u32 %s525, 4
          %s770 = scalar_lea.vmem %s7, %s769
          %v771 = vld [vmem:[%s770] sm:$0xf]
          %vm772 = vcmask 31744
          %v774 = vsel %vm772, %v692, 0
          %vm776 = vcmask 1043456
          %v778 = vsel %vm776, %v771, 0
          %780 = vmatprep.subr.mxu0 0.0
          %781 = vmatpush1.msra.mxu0 0.0
          %782 = vmatprep.subr.mxu0 0.0
          %783 = vmatpush1.msra.mxu0 0.0
          %784 = vmatprep.subr.mxu0 0.0
          %785 = vmatpush1.msra.mxu0 0.0
          %786 = vmatprep.subr.mxu0 0.0
          %787 = vmatpush1.msra.mxu0 0.0
          %788 = vmatprep.subr.mxu0 0.0
          %789 = vmatpush1.msra.mxu0 0.0
          %790 = vmatprep.subr.mxu0 0.0
          %791 = vmatpush1.msra.mxu0 0.0
          %792 = vmatprep.subr.mxu0 0.0
          %793 = vmatpush1.msra.mxu0 0.0
          %794 = vmatprep.subr.mxu0 0.0
          %795 = vmatpush1.msra.mxu0 0.0
          %796 = vmatprep.subr.mxu0 0.0
          %797 = vmatpush1.msra.mxu0 0.0
          %798 = vmatprep.subr.mxu0 0.0
          %799 = vmatpush1.msra.mxu0 0.0
          %800 = vmatprep.subr.mxu0 0.0
          %801 = vmatpush1.msra.mxu0 0.0
          %802 = vmatprep.subr.mxu0 0.0
          %803 = vmatpush1.msra.mxu0 0.0
          %804 = vmatprep.subr.mxu0 0.0
          %805 = vmatpush1.msra.mxu0 0.0
          %806 = vmatprep.subr.mxu0 0.0
          %807 = vmatpush1.msra.mxu0 0.0
          %808 = vmatprep.subr.mxu0 0.0
          %809 = vmatpush1.msra.mxu0 0.0
          %810 = vmatprep.subr.mxu0 0.0
          %811 = vmatpush1.msra.mxu0 %v778
          %812 = vmatprep.subr.mxu0 0.0
          %813 = vmatpush2.msra.mxu0 0.0
          %814 = vmatprep.subr.mxu0 0.0
          %815 = vmatpush2.msra.mxu0 0.0
          %816 = vmatprep.subr.mxu0 0.0
          %817 = vmatpush2.msra.mxu0 0.0
          %818 = vmatprep.subr.mxu0 0.0
          %819 = vmatpush2.msra.mxu0 0.0
          %820 = vmatprep.subr.mxu0 0.0
          %821 = vmatpush2.msra.mxu0 0.0
          %822 = vmatprep.subr.mxu0 0.0
          %823 = vmatpush2.msra.mxu0 0.0
          %824 = vmatprep.subr.mxu0 0.0
          %825 = vmatpush2.msra.mxu0 0.0
          %826 = vmatprep.subr.mxu0 0.0
          %827 = vmatpush2.msra.mxu0 0.0
          %828 = vmatprep.subr.mxu0 0.0
          %829 = vmatpush2.msra.mxu0 0.0
          %830 = vmatprep.subr.mxu0 0.0
          %831 = vmatpush2.msra.mxu0 0.0
          %832 = vmatprep.subr.mxu0 0.0
          %833 = vmatpush2.msra.mxu0 0.0
          %834 = vmatprep.subr.mxu0 0.0
          %835 = vmatpush2.msra.mxu0 0.0
          %836 = vmatprep.subr.mxu0 0.0
          %837 = vmatpush2.msra.mxu0 0.0
          %838 = vmatprep.subr.mxu0 0.0
          %839 = vmatpush2.msra.mxu0 0.0
          %840 = vmatprep.subr.mxu0 0.0
          %841 = vmatpush2.msra.mxu0 0.0
          %842 = vmatprep.subr.mxu0 0.0
          %843 = vmatpush2.msra.mxu0 0.0
          %844 = vmatprep.mubr.f32.mxu0 0.0
          %845 = vmatmul.mubr.f32.gmra.mxu0 %v774
          %v846 = vpop.f32.mrf.mxu0
          %v847 = vadd.f32 0.0, %v846
          %v848 = vpop.f32.mrf.mxu0
          %849 = vdwg.mxu0
          %v850 = vadd.f32 %v531, %v847
        $region107: #{tpu_custom_call.1} parent=97 // loop_footer
          %s529 = sadd.s32 1, %s525
        $region108: #{tpu_custom_call.1} parent=97 // loop_footer_branch
          %524 = sbr.rel target = $region104
        $region109: #{tpu_custom_call.1} parent=97 // loop_exit
          _
        %v851 = vld [vmem:[%s4] sm:$0x1]
        %v853 = vlaneseq
        %v854 = vshrl.u32 %v853, 7
        %v855 = vsub.s32 0, %v854
        %v856 = vrot.slane %v851, %v855
        %v858 = vadd.f32 %v530, %v856
        %vm859 = vcmask 261120
        %860 = vst.msk [vmem:[%s509] sm:$0xff] %vm859, %v858
        %v861 = vld [vmem:[%s8] sm:$0x1]
        %v863 = vlaneseq
        %v864 = vshrl.u32 %v863, 7
        %v865 = vsub.s32 0, %v864
        %v866 = vrot.slane %v861, %v865
        %v868 = vadd.f32 %v531, %v866
        %v869 = vmax.f32 %v868, 0.0
        %v870 = vld [vmem:[%s9] sm:$0x1]
        %v872 = vlaneseq
        %v873 = vshrl.u32 %v872, 7
        %v874 = vsub.s32 0, %v873
        %v875 = vrot.slane %v870, %v874
        %v877 = vmul.f32 %v869, %v875
        %vm878 = vcmask 130048
        %v879 = vsel %vm878, %v877, 0.0
        %880 = vadd.xlane.f32.xlu0 %v879
        %v881 = vpop.xlane.xlu0 %880
        %v882 = vld [vmem:[#allocation2] sm:$0x1]
        %v884 = vlaneseq
        %v885 = vshrl.u32 %v884, 7
        %v886 = vsub.s32 0, %v885
        %v887 = vrot.slane %v882, %v886
        %v889 = vadd.f32 %v881, %v887
        %v890 = vtanh.pop %v889
        %vm891 = vcmask 7168
        %892 = vst.msk [vmem:[%s519] sm:$0xff] %vm891, %v890
        %s893 = sand.u32 %s273, 1
        %s894 = scalar_lea.sflag [#allocation5], %s893
        %s895 = sand.u32 %s273, 1
        %s896 = smul.addr %s895, 8
        %s897 = scalar_lea.vmem [#allocation4], %s896
        %p898 = scmp.lt.s32.totalorder %s29, 1
        %s899 = scalar_select %p898, %s29, 1
        %s900 = smul.addr %s899, 8
        %s901 = scalar_lea.vmem %s12, %s900
        // Predicated region
        $region110: #{tpu_custom_call.1} parent=97 // pred_check
          %p902 = pneg %p283
        $region111: #{tpu_custom_call.1} parent=97 // pred_check_branch
          %904 = sbr.rel (%p902) target = $region113
        $region112: #{tpu_custom_call.1} parent=97 // pred_region
          %s906 = ssub.s32 128, 128
          %907 = vsyncadd %s894, %s906
          %s908 = smul.addr %s29, 128
          %s909 = scalar_lea.hbm %s11, %s908
          %s911 = sshll.u32 %s897, 4
          %s912 = int_to_ptr.vmem [resolvable:$true] %s911
          %914 = dma.vmem_to_hbm [thread:$0]  %s912, 128, %s909, %s894
        $region113: #{tpu_custom_call.1} parent=97 // pred_fallthru
          _
        // Predicated region
        $region114: #{tpu_custom_call.1} parent=97 // pred_check
          %p915 = pneg %p309
        $region115: #{tpu_custom_call.1} parent=97 // pred_check_branch
          %917 = sbr.rel (%p915) target = $region117
        $region116: #{tpu_custom_call.1} parent=97 // pred_region
          _
        $region117: #{tpu_custom_call.1} parent=97 // pred_fallthru
          _
      $region98: #{tpu_custom_call.1} parent=5 // pred_fallthru
        _
      %p918 = scmp.le.s32.totalorder 2, %s24
      // Predicated region
      $region118: #{tpu_custom_call.1} parent=5 // pred_check
        %p919 = pneg %p918
      $region119: #{tpu_custom_call.1} parent=5 // pred_check_branch
        %921 = sbr.rel (%p919) target = $region121
      $region120: #{tpu_custom_call.1} parent=5 // pred_region
        %s922 = ssub.s32 %s24, 2
        // Predicated region
        $region122: #{tpu_custom_call.1} parent=120 // pred_check
          %p923 = pneg %p289
        $region123: #{tpu_custom_call.1} parent=120 // pred_check_branch
          %925 = sbr.rel (%p923) target = $region125
        $region124: #{tpu_custom_call.1} parent=120 // pred_region
          %s926 = sand.u32 %s274, 1
          %s927 = scalar_lea.sflag [#allocation5], %s926
          %s928 = sand.u32 %s274, 1
          %s929 = smul.addr %s928, 8
          %s930 = scalar_lea.vmem [#allocation4], %s929
          %931 = dma.done %s927, 128
        $region125: #{tpu_custom_call.1} parent=120 // pred_fallthru
          _
        // Predicated region
        $region126: #{tpu_custom_call.1} parent=120 // pred_check
          %p932 = pneg %p315
        $region127: #{tpu_custom_call.1} parent=120 // pred_check_branch
          %934 = sbr.rel (%p932) target = $region129
        $region128: #{tpu_custom_call.1} parent=120 // pred_region
          %p935 = scmp.lt.s32.totalorder %s30, 1
          %s936 = scalar_select %p935, %s30, 1
          %s937 = smul.addr %s936, 8
          %s938 = scalar_lea.vmem %s12, %s937
        $region129: #{tpu_custom_call.1} parent=120 // pred_fallthru
          _
      $region121: #{tpu_custom_call.1} parent=5 // pred_fallthru
        _
    $region6: #{tpu_custom_call.1} parent=1 // loop_footer
      %s28 = sadd.s32 1, %s24
    $region7: #{tpu_custom_call.1} parent=1 // loop_footer_branch
      %23 = sbr.rel target = $region3
    $region8: #{tpu_custom_call.1} parent=1 // loop_exit
      _
    %939 = vsyncpa [#allocation5], 1
    %s940 = scalar_lea.sflag [#allocation5], 1
    %941 = vsyncpa %s940, 1

</llo_original>
